<compile_context>
chip_gen: v7x
topology: tpu7x:2x2x1
jax: 0.10.0
libtpu: 0.0.40
codegen_flags: <defaults>
</compile_context>

<pallas_src>
import functools

import jax
import jax.numpy as jnp
from jax.experimental import pallas as pl
from jax.experimental.pallas import tpu as pltpu

LANE = 128          # slab lane width
LANE_CHUNK = 512    # batch columns processed per inner sub-chunk


def _round_up(n, m):
    return ((n + m - 1) // m) * m


def _cdiv(a, b):
    return (a + b - 1) // b


def irisnet_kernel(layout, lane_chunk, slab_ref, x_ref, out_ref):
    """Fused 3-layer MLP on one batch tile.

    layout:   static tuple of (w_row, b_row, out_features, in_features).
    slab_ref: [rows, 128] f32 packed params (resident across grid steps).
    x_ref:    [tb, in_features]  f32 batch-major tile (straight from HBM).
    out_ref:  [out_features, tb] f32 feature-major (batch on the lane axis).
    """
    # Load the tiny weights / biases once per grid step with static Ref slices.
    ws = [slab_ref[rw:rw + o, 0:i] for (rw, _, o, i) in layout]
    bs = [slab_ref[rb:rb + o, 0:1] for (_, rb, o, _) in layout]
    n_layers = len(layout)
    tb = x_ref.shape[0]

    def compute(off, width):
        xc = x_ref[pl.ds(off, width), :]                       # [width, in]
        # Layer 1: contract the shared `in` axis of W [out, in] with
        # x [width, in] (a @ b.T form) -> lane-dense h [out, width]; the batch
        # moves onto the lane axis here, with no HBM-side transpose.
        h = jax.lax.dot_general(ws[0], xc, (((1,), (1,)), ((), ())),
                                preferred_element_type=jnp.float32) + bs[0]
        h = jnp.maximum(h, 0.0)
        for li in range(1, n_layers):
            h = jnp.dot(ws[li], h, preferred_element_type=jnp.float32) + bs[li]
            if li < n_layers - 1:                              # ReLU on hidden layers
                h = jnp.maximum(h, 0.0)
        out_ref[:, pl.ds(off, width)] = h.astype(out_ref.dtype)

    if tb > lane_chunk and tb % lane_chunk == 0:
        # Walk the tile in sub-chunks so intermediates stay in vregs (no spills).
        def body(c, carry):
            off = pl.multiple_of(c * lane_chunk, lane_chunk)
            compute(off, lane_chunk)
            return carry
        jax.lax.fori_loop(0, tb // lane_chunk, body, 0, unroll=True)
    else:
        compute(0, tb)


def _pack_params(params):
    """Pack (W1,b1,W2,b2,W3,b3) (torch layout: W [out,in], b [out]) into one
    [rows, 128] f32 slab.  Weights at lane offset 0; each bias in column 0 of
    its own 8-aligned row block (cannot collide with weight columns).
    Returns (slab, layout); layout is a static tuple of
    (w_row, b_row, out_features, in_features) per layer."""
    ws, bs = params[0::2], params[1::2]
    layout, r = [], 0
    for w in ws:
        out_d, in_d = w.shape
        rw = r
        r = _round_up(r + out_d, 8)
        rb = r
        r = _round_up(r + out_d, 8)
        layout.append((rw, rb, out_d, in_d))
    rows = max(_round_up(r, 8), 8)
    slab = jnp.zeros((rows, LANE), jnp.float32)
    for (rw, rb, out_d, in_d), w, b in zip(layout, ws, bs):
        slab = slab.at[rw:rw + out_d, 0:in_d].set(w.astype(jnp.float32))
        slab = slab.at[rb:rb + out_d, 0].set(b.astype(jnp.float32))
    return slab, tuple(layout)


def _choose_tile(batch, batch_tile):
    """Batch tile / grid selection.  Tiles are multiples of 256 (MXU-N width on
    v6e/v7x); tiny batches use one full-batch block; batches that would fit a
    single tile are split in two so both v7x TensorCores get work."""
    if batch <= 256:
        return batch, 1
    batch_tile = max(256, (batch_tile // 256) * 256)
    tile = min(batch_tile, _round_up(batch, 256))
    if _cdiv(batch, tile) < 2:
        tile = _round_up(_cdiv(batch, 2), 256)
    return tile, _cdiv(batch, tile)


def irisnet_forward(x, params, *, batch_tile=4096, feature_major_output=False):
    """Fused MLP forward.  x: [B, in_features] f32 -> [B, out_features] f32
    (or [out_features, B] if feature_major_output=True, which also skips the
    final relayout of the 3-row result)."""
    B, in_features = x.shape
    slab, layout = _pack_params(params)
    out_features = layout[-1][2]
    slab_rows = slab.shape[0]

    tb, grid_n = _choose_tile(B, batch_tile)

    flops = 2 * B * sum(o * i for (_, _, o, i) in layout)
    bytes_accessed = 4 * (B * in_features + B * out_features + slab.size)

    out_fm = pl.pallas_call(
        functools.partial(irisnet_kernel, layout, LANE_CHUNK),
        out_shape=jax.ShapeDtypeStruct((out_features, B), jnp.float32),
        grid=(grid_n,),
        in_specs=[
            # Packed params: block index constant -> fetched once, stays resident.
            pl.BlockSpec((slab_rows, LANE), lambda i: (0, 0)),
            # Batch-major x tile: one contiguous 4*in_features*tb-byte HBM read.
            pl.BlockSpec((tb, in_features), lambda i: (i, 0)),
        ],
        out_specs=pl.BlockSpec((out_features, tb), lambda i: (0, i)),
        compiler_params=pltpu.CompilerParams(
            dimension_semantics=("parallel",),   # v7x: batch blocks across 2 TCs
        ),
        cost_estimate=pl.CostEstimate(
            flops=flops, transcendentals=0, bytes_accessed=bytes_accessed),
    )(slab, x.astype(jnp.float32))

    if feature_major_output:
        return out_fm
    # Tiny relayout (out_features = 3 rows) to keep the module's [B, 3] output.
    return out_fm.T


def init_params(key, input_size=4, hidden1=10, hidden2=8, output_size=3):
    """PyTorch-style init; weights in torch layout W [out, in], b [out]."""
    dims = [(input_size, hidden1), (hidden1, hidden2), (hidden2, output_size)]
    params = []
    for fan_in, fan_out in dims:
        key, kw, kb = jax.random.split(key, 3)
        bound = 1.0 / (fan_in ** 0.5)
        params.append(jax.random.uniform(kw, (fan_out, fan_in), jnp.float32, -bound, bound))
        params.append(jax.random.uniform(kb, (fan_out,), jnp.float32, -bound, bound))
    return tuple(params)


def reference_forward(x, params):
    """Plain-JAX reference matching the PyTorch module."""
    w1, b1, w2, b2, w3, b3 = params
    hp = jax.lax.Precision.HIGHEST
    h = jnp.maximum(jnp.dot(x, w1.T, precision=hp) + b1, 0.0)
    h = jnp.maximum(jnp.dot(h, w2.T, precision=hp) + b2, 0.0)
    return jnp.dot(h, w3.T, precision=hp) + b3


def _bf16_exact(t):
    # Demo data rounded to bf16-representable values so the f32 check is
    # independent of how many bf16 passes the MXU uses to emulate f32 matmuls.
    return jnp.asarray(t).astype(jnp.bfloat16).astype(jnp.float32)


if __name__ == "__main__":
    key = jax.random.PRNGKey(0)
    key, kp, k1, k2 = jax.random.split(key, 4)
    params = tuple(_bf16_exact(p) for p in init_params(kp))

    fwd = jax.jit(irisnet_forward)

    # Small batch: single full-batch block (tb == B, no tiling).
    x_small = _bf16_exact(jax.random.normal(k1, (8, 4), jnp.float32))
    out_small = jax.block_until_ready(fwd(x_small, params))
    ref_small = reference_forward(x_small, params)
    assert out_small.shape == (8, 3), out_small.shape
    assert jnp.allclose(out_small, ref_small, atol=1e-4, rtol=1e-4), "mismatch (B=8)"

    # Ragged batch: 2-step parallel grid with a partial boundary block.
    x_big = _bf16_exact(jax.random.normal(k2, (777, 4), jnp.float32))
    out_big = jax.block_until_ready(fwd(x_big, params))
    ref_big = reference_forward(x_big, params)
    assert out_big.shape == (777, 3), out_big.shape
    assert jnp.allclose(out_big, ref_big, atol=1e-4, rtol=1e-4), "mismatch (B=777)"

    print("KERNEL_OK")
</pallas_src>

<mosaic_0001>
module attributes {stable_mosaic.version = 11 : i64} {
  func.func @irisnet_kernel(%arg0: i32, %arg1: memref<64x128xf32, #tpu.memory_space<vmem>>, %arg2: memref<8x4xf32, #tpu.memory_space<vmem>>, %arg3: memref<3x8xf32, #tpu.memory_space<vmem>>) attributes {dimension_semantics = [#tpu.dimension_semantics<parallel>], iteration_bounds = array<i64: 1>, scalar_prefetch = 0 : i64, scratch_operands = 0 : i64, tpu.core_type = #tpu.core_type<tc>, window_params = [{pipeline_mode = #tpu.pipeline_mode<synchronous>, transform_indices = @transform_0, window_bounds = array<i64: 64, 128>}, {transform_indices = @transform_1, window_bounds = array<i64: 8, 4>}, {transform_indices = @transform_2, window_bounds = array<i64: 3, 8>}]} {
    %c0 = arith.constant 0 : index
    %c0_0 = arith.constant 0 : index
    %0 = vector.load %arg1[%c0, %c0_0] : memref<64x128xf32, #tpu.memory_space<vmem>>, vector<10x4xf32>
    %c32 = arith.constant 32 : index
    %c0_1 = arith.constant 0 : index
    %1 = vector.load %arg1[%c32, %c0_1] : memref<64x128xf32, #tpu.memory_space<vmem>>, vector<8x10xf32>
    %c48 = arith.constant 48 : index
    %c0_2 = arith.constant 0 : index
    %2 = vector.load %arg1[%c48, %c0_2] : memref<64x128xf32, #tpu.memory_space<vmem>>, vector<3x8xf32>
    %c16 = arith.constant 16 : index
    %c0_3 = arith.constant 0 : index
    %3 = vector.load %arg1[%c16, %c0_3] : memref<64x128xf32, #tpu.memory_space<vmem>>, vector<10x1xf32>
    %c40 = arith.constant 40 : index
    %c0_4 = arith.constant 0 : index
    %4 = vector.load %arg1[%c40, %c0_4] : memref<64x128xf32, #tpu.memory_space<vmem>>, vector<8x1xf32>
    %c56 = arith.constant 56 : index
    %c0_5 = arith.constant 0 : index
    %5 = vector.load %arg1[%c56, %c0_5] : memref<64x128xf32, #tpu.memory_space<vmem>>, vector<3x1xf32>
    %c0_6 = arith.constant 0 : index
    %c0_7 = arith.constant 0 : index
    %6 = vector.load %arg2[%c0_6, %c0_7] : memref<8x4xf32, #tpu.memory_space<vmem>>, vector<8x4xf32>
    %cst = arith.constant dense<0.000000e+00> : vector<10x8xf32>
    %7 = tpu.matmul %0, %6, %cst {dimension_numbers = #tpu.dot_dimension_numbers<[1], [1], [0], [0], [0, 0, 1, 0], [], []>} : vector<10x4xf32>, vector<8x4xf32>, vector<10x8xf32> -> vector<10x8xf32>
    %8 = vector.broadcast %3 : vector<10x1xf32> to vector<10x8xf32>
    %9 = arith.addf %7, %8 : vector<10x8xf32>
    %cst_8 = arith.constant 0.000000e+00 : f32
    %10 = vector.broadcast %cst_8 : f32 to vector<10x8xf32>
    %11 = arith.maximumf %9, %10 : vector<10x8xf32>
    %cst_9 = arith.constant dense<0.000000e+00> : vector<8x8xf32>
    %12 = tpu.matmul %1, %11, %cst_9 {dimension_numbers = #tpu.dot_dimension_numbers<[1], [0], [0], [1], [0, 0, 1, 1], [], []>} : vector<8x10xf32>, vector<10x8xf32>, vector<8x8xf32> -> vector<8x8xf32>
    %13 = vector.broadcast %4 : vector<8x1xf32> to vector<8x8xf32>
    %14 = arith.addf %12, %13 : vector<8x8xf32>
    %cst_10 = arith.constant 0.000000e+00 : f32
    %15 = vector.broadcast %cst_10 : f32 to vector<8x8xf32>
    %16 = arith.maximumf %14, %15 : vector<8x8xf32>
    %cst_11 = arith.constant dense<0.000000e+00> : vector<3x8xf32>
    %17 = tpu.matmul %2, %16, %cst_11 {dimension_numbers = #tpu.dot_dimension_numbers<[1], [0], [0], [1], [0, 0, 1, 1], [], []>} : vector<3x8xf32>, vector<8x8xf32>, vector<3x8xf32> -> vector<3x8xf32>
    %18 = vector.broadcast %5 : vector<3x1xf32> to vector<3x8xf32>
    %19 = arith.addf %17, %18 : vector<3x8xf32>
    %c0_12 = arith.constant 0 : index
    %c0_13 = arith.constant 0 : index
    %20 = vector.load %arg3[%c0_12, %c0_13] : memref<3x8xf32, #tpu.memory_space<vmem>>, vector<3x8xf32>
    tpu.vector_store %arg3[%c0_12, %c0_13], %19 {strides = array<i32>} : memref<3x8xf32, #tpu.memory_space<vmem>>, vector<3x8xf32>,
    return
  }
  func.func @transform_0(%arg0: i32) -> (i32, i32) {
    %c0_i32 = arith.constant 0 : i32
    %c0_i32_0 = arith.constant 0 : i32
    %c0_i32_1 = arith.constant 0 : i32
    return %c0_i32, %c0_i32_0 : i32, i32
  }
  func.func @transform_1(%arg0: i32) -> (i32, i32) {
    %c0_i32 = arith.constant 0 : i32
    %c0_i32_0 = arith.constant 0 : i32
    return %arg0, %c0_i32 : i32, i32
  }
  func.func @transform_2(%arg0: i32) -> (i32, i32) {
    %c0_i32 = arith.constant 0 : i32
    %c0_i32_0 = arith.constant 0 : i32
    return %c0_i32, %arg0 : i32, i32
  }
}

</mosaic_0001>

<llo_original>
// kernel: irisnet_forward.1
$region0: #{irisnet_forward.1}
  #allocation0 [shape = 'u32[]', space=smem, size = 0x4, offset = 0x4, fixed_abs, tag = 'smem constant byte address 0x4 - core index']
  #allocation1 [shape = 'u32[144,128]{1,0:T(1,128)}', space=vmem, size = 0x12000, scoped, tag = 'internal scratch']
  %s0 = inlined_call_operand.vmem [shape: f32[64,128], index: 0, kind: input, shape index: {}]
  %s1 = inlined_call_operand.vmem [shape: f32[8,4], index: 1, kind: input, shape index: {}]
  %s2 = inlined_call_operand.hbm [shape: f32[3,8], index: 2, kind: output, shape index: {}]
  %s3 = sld [smem:[#allocation0]]
  $region18: #{irisnet_forward.1} parent=0
    _
  %s5 = ssub.s32 1, %s3
  %s6 = scalar_select 0, %s5, %s3
  $region1: #{irisnet_forward.1} parent=0
    #allocation2 [shape = 'u8[2048]{0}', space=vmem, size = 0x800, scoped, tag = 'output window, operand 0, single buffered']
    #allocation3 [shape = 's32[1]{0}', space=sflag, size = 0x4, scoped, tag = 'scoped memory for irisnet_forward.1']
    %7 = vsyncpa [#allocation3], 0
    // Predicated region
    $region2: #{irisnet_forward.1} parent=1 // pred_check
      _
    $region3: #{irisnet_forward.1} parent=1 // pred_check_branch
      %9 = sbr.rel (0) target = $region5
    $region4: #{irisnet_forward.1} parent=1 // pred_region
      _
    $region5: #{irisnet_forward.1} parent=1 // pred_fallthru
      _
    // Predicated region
    $region6: #{irisnet_forward.1} parent=1 // pred_check
      _
    $region7: #{irisnet_forward.1} parent=1 // pred_check_branch
      %11 = sbr.rel (0) target = $region9
    $region8: #{irisnet_forward.1} parent=1 // pred_region
      _
    $region9: #{irisnet_forward.1} parent=1 // pred_fallthru
      _
    %v12 = vld [vmem:[%s0] sm:$0xff]
    %v13 = vld [vmem:[%s0 + $0x8] sm:$0x3]
    %v14 = vld [vmem:[%s0 + $0x20] sm:$0xff]
    %v15 = vld [vmem:[%s0 + $0x30] sm:$0x7]
    %v16 = vld [vmem:[%s0 + $0x10] sm:$0xff]
    %v17 = vld [vmem:[%s0 + $0x18] sm:$0x3]
    %v18 = vld [vmem:[%s0 + $0x28] sm:$0xff]
    %v19 = vld [vmem:[%s0 + $0x38] sm:$0x7]
    %v20 = vld [vmem:[%s1] sm:$0xff]
    %22 = vset.pattern.permute.xlu0 0
    %23 = vperm.xlu0 %22, %v16
    %v24 = vpop.permute.xlu0 %23
    %27 = vset.pattern.permute.xlu0 0
    %28 = vperm.xlu0 %27, %v17
    %v29 = vpop.permute.xlu0 %28
    %vm31 = vcmask 31744
    %v33 = vsel %vm31, %v12, 0
    %v36 = vsel %vm31, %v13, 0
    %v39 = vsel %vm31, %v20, 0
    %41 = vmatprep.subr.mxu0 0.0
    %42 = vmatpush1.xpose.msra.mxu0 %v39
    %43 = vmatprep.subr.mxu0 0.0
    %44 = vmatpush1.xpose.msra.mxu0 0.0
    %45 = vmatprep.subr.mxu0 0.0
    %46 = vmatpush1.xpose.msra.mxu0 0.0
    %47 = vmatprep.subr.mxu0 0.0
    %48 = vmatpush1.xpose.msra.mxu0 0.0
    %49 = vmatprep.subr.mxu0 0.0
    %50 = vmatpush1.xpose.msra.mxu0 0.0
    %51 = vmatprep.subr.mxu0 0.0
    %52 = vmatpush1.xpose.msra.mxu0 0.0
    %53 = vmatprep.subr.mxu0 0.0
    %54 = vmatpush1.xpose.msra.mxu0 0.0
    %55 = vmatprep.subr.mxu0 0.0
    %56 = vmatpush1.xpose.msra.mxu0 0.0
    %57 = vmatprep.subr.mxu0 0.0
    %58 = vmatpush1.xpose.msra.mxu0 0.0
    %59 = vmatprep.subr.mxu0 0.0
    %60 = vmatpush1.xpose.msra.mxu0 0.0
    %61 = vmatprep.subr.mxu0 0.0
    %62 = vmatpush1.xpose.msra.mxu0 0.0
    %63 = vmatprep.subr.mxu0 0.0
    %64 = vmatpush1.xpose.msra.mxu0 0.0
    %65 = vmatprep.subr.mxu0 0.0
    %66 = vmatpush1.xpose.msra.mxu0 0.0
    %67 = vmatprep.subr.mxu0 0.0
    %68 = vmatpush1.xpose.msra.mxu0 0.0
    %69 = vmatprep.subr.mxu0 0.0
    %70 = vmatpush1.xpose.msra.mxu0 0.0
    %71 = vmatprep.subr.mxu0 0.0
    %72 = vmatpush1.xpose.msra.mxu0 0.0
    %73 = vmatprep.subr.mxu0 0.0
    %74 = vmatpush1.xpose.msra.mxu0 0.0
    %75 = vmatprep.subr.mxu0 0.0
    %76 = vmatpush1.xpose.msra.mxu0 0.0
    %77 = vmatprep.subr.mxu0 0.0
    %78 = vmatpush1.xpose.msra.mxu0 0.0
    %79 = vmatprep.subr.mxu0 0.0
    %80 = vmatpush1.xpose.msra.mxu0 0.0
    %81 = vmatprep.subr.mxu0 0.0
    %82 = vmatpush1.xpose.msra.mxu0 0.0
    %83 = vmatprep.subr.mxu0 0.0
    %84 = vmatpush1.xpose.msra.mxu0 0.0
    %85 = vmatprep.subr.mxu0 0.0
    %86 = vmatpush1.xpose.msra.mxu0 0.0
    %87 = vmatprep.subr.mxu0 0.0
    %88 = vmatpush1.xpose.msra.mxu0 0.0
    %89 = vmatprep.subr.mxu0 0.0
    %90 = vmatpush1.xpose.msra.mxu0 0.0
    %91 = vmatprep.subr.mxu0 0.0
    %92 = vmatpush1.xpose.msra.mxu0 0.0
    %93 = vmatprep.subr.mxu0 0.0
    %94 = vmatpush1.xpose.msra.mxu0 0.0
    %95 = vmatprep.subr.mxu0 0.0
    %96 = vmatpush1.xpose.msra.mxu0 0.0
    %97 = vmatprep.subr.mxu0 0.0
    %98 = vmatpush1.xpose.msra.mxu0 0.0
    %99 = vmatprep.subr.mxu0 0.0
    %100 = vmatpush1.xpose.msra.mxu0 0.0
    %101 = vmatprep.subr.mxu0 0.0
    %102 = vmatpush1.xpose.msra.mxu0 0.0
    %103 = vmatprep.subr.mxu0 0.0
    %104 = vmatpush1.xpose.msra.mxu0 0.0
    %105 = vmatprep.mubr.f32.mxu0 0.0
    %106 = vmatmul.mubr.f32.gmra.mrb[0].mxu0 %v33
    %v107 = vpop.f32.mrb[0].mxu0
    %v108 = vadd.f32 %v24, %v107
    %v109 = vpop.f32.mrb[0].mxu0
    %110 = vmatprep.mubr.f32.mxu0 0.0
    %111 = vmatmul.mubr.f32.gmra.mrb[0].mxu0 %v36
    %v112 = vpop.f32.mrb[0].mxu0
    %v113 = vadd.f32 %v29, %v112
    %v114 = vpop.f32.mrb[0].mxu0
    %115 = vdwg.mxu0
    %v116 = vmax.f32 %v108, 0.0
    %v117 = vmax.f32 %v113, 0.0
    %119 = vset.pattern.permute.xlu0 0
    %120 = vperm.xlu0 %119, %v18
    %v121 = vpop.permute.xlu0 %120
    %vm123 = vcmask 80896
    %v125 = vsel %vm123, %v14, 0
    %vm127 = vcmask 1041408
    %v129 = vsel %vm127, %v117, 0
    %131 = vmatprep.subr.mxu0 0.0
    %132 = vmatpush1.msra.mxu0 %v116
    %133 = vmatprep.subr.mxu0 0.0
    %134 = vmatpush1.msra.mxu0 %v129
    %135 = vmatprep.subr.mxu0 0.0
    %136 = vmatpush1.msra.mxu0 0.0
    %137 = vmatprep.subr.mxu0 0.0
    %138 = vmatpush1.msra.mxu0 0.0
    %139 = vmatprep.subr.mxu0 0.0
    %140 = vmatpush1.msra.mxu0 0.0
    %141 = vmatprep.subr.mxu0 0.0
    %142 = vmatpush1.msra.mxu0 0.0
    %143 = vmatprep.subr.mxu0 0.0
    %144 = vmatpush1.msra.mxu0 0.0
    %145 = vmatprep.subr.mxu0 0.0
    %146 = vmatpush1.msra.mxu0 0.0
    %147 = vmatprep.subr.mxu0 0.0
    %148 = vmatpush1.msra.mxu0 0.0
    %149 = vmatprep.subr.mxu0 0.0
    %150 = vmatpush1.msra.mxu0 0.0
    %151 = vmatprep.subr.mxu0 0.0
    %152 = vmatpush1.msra.mxu0 0.0
    %153 = vmatprep.subr.mxu0 0.0
    %154 = vmatpush1.msra.mxu0 0.0
    %155 = vmatprep.subr.mxu0 0.0
    %156 = vmatpush1.msra.mxu0 0.0
    %157 = vmatprep.subr.mxu0 0.0
    %158 = vmatpush1.msra.mxu0 0.0
    %159 = vmatprep.subr.mxu0 0.0
    %160 = vmatpush1.msra.mxu0 0.0
    %161 = vmatprep.subr.mxu0 0.0
    %162 = vmatpush1.msra.mxu0 0.0
    %163 = vmatprep.subr.mxu0 0.0
    %164 = vmatpush1.msra.mxu0 0.0
    %165 = vmatprep.subr.mxu0 0.0
    %166 = vmatpush1.msra.mxu0 0.0
    %167 = vmatprep.subr.mxu0 0.0
    %168 = vmatpush1.msra.mxu0 0.0
    %169 = vmatprep.subr.mxu0 0.0
    %170 = vmatpush1.msra.mxu0 0.0
    %171 = vmatprep.subr.mxu0 0.0
    %172 = vmatpush1.msra.mxu0 0.0
    %173 = vmatprep.subr.mxu0 0.0
    %174 = vmatpush1.msra.mxu0 0.0
    %175 = vmatprep.subr.mxu0 0.0
    %176 = vmatpush1.msra.mxu0 0.0
    %177 = vmatprep.subr.mxu0 0.0
    %178 = vmatpush1.msra.mxu0 0.0
    %179 = vmatprep.subr.mxu0 0.0
    %180 = vmatpush1.msra.mxu0 0.0
    %181 = vmatprep.subr.mxu0 0.0
    %182 = vmatpush1.msra.mxu0 0.0
    %183 = vmatprep.subr.mxu0 0.0
    %184 = vmatpush1.msra.mxu0 0.0
    %185 = vmatprep.subr.mxu0 0.0
    %186 = vmatpush1.msra.mxu0 0.0
    %187 = vmatprep.subr.mxu0 0.0
    %188 = vmatpush1.msra.mxu0 0.0
    %189 = vmatprep.subr.mxu0 0.0
    %190 = vmatpush1.msra.mxu0 0.0
    %191 = vmatprep.subr.mxu0 0.0
    %192 = vmatpush1.msra.mxu0 0.0
    %193 = vmatprep.subr.mxu0 0.0
    %194 = vmatpush1.msra.mxu0 0.0
    %195 = vmatprep.mubr.f32.mxu0 0.0
    %196 = vmatmul.mubr.f32.gmra.mrb[0].mxu0 %v125
    %v197 = vpop.f32.mrb[0].mxu0
    %v198 = vadd.f32 %v121, %v197
    %v199 = vpop.f32.mrb[0].mxu0
    %200 = vdwg.mxu0
    %v201 = vmax.f32 %v198, 0.0
    %203 = vset.pattern.permute.xlu0 0
    %204 = vperm.xlu0 %203, %v19
    %v205 = vpop.permute.xlu0 %204
    %vm207 = vcmask 64512
    %v209 = vsel %vm207, %v15, 0
    %211 = vmatprep.subr.mxu0 0.0
    %212 = vmatpush1.msra.mxu0 %v201
    %213 = vmatprep.subr.mxu0 0.0
    %214 = vmatpush1.msra.mxu0 0.0
    %215 = vmatprep.subr.mxu0 0.0
    %216 = vmatpush1.msra.mxu0 0.0
    %217 = vmatprep.subr.mxu0 0.0
    %218 = vmatpush1.msra.mxu0 0.0
    %219 = vmatprep.subr.mxu0 0.0
    %220 = vmatpush1.msra.mxu0 0.0
    %221 = vmatprep.subr.mxu0 0.0
    %222 = vmatpush1.msra.mxu0 0.0
    %223 = vmatprep.subr.mxu0 0.0
    %224 = vmatpush1.msra.mxu0 0.0
    %225 = vmatprep.subr.mxu0 0.0
    %226 = vmatpush1.msra.mxu0 0.0
    %227 = vmatprep.subr.mxu0 0.0
    %228 = vmatpush1.msra.mxu0 0.0
    %229 = vmatprep.subr.mxu0 0.0
    %230 = vmatpush1.msra.mxu0 0.0
    %231 = vmatprep.subr.mxu0 0.0
    %232 = vmatpush1.msra.mxu0 0.0
    %233 = vmatprep.subr.mxu0 0.0
    %234 = vmatpush1.msra.mxu0 0.0
    %235 = vmatprep.subr.mxu0 0.0
    %236 = vmatpush1.msra.mxu0 0.0
    %237 = vmatprep.subr.mxu0 0.0
    %238 = vmatpush1.msra.mxu0 0.0
    %239 = vmatprep.subr.mxu0 0.0
    %240 = vmatpush1.msra.mxu0 0.0
    %241 = vmatprep.subr.mxu0 0.0
    %242 = vmatpush1.msra.mxu0 0.0
    %243 = vmatprep.subr.mxu0 0.0
    %244 = vmatpush1.msra.mxu0 0.0
    %245 = vmatprep.subr.mxu0 0.0
    %246 = vmatpush1.msra.mxu0 0.0
    %247 = vmatprep.subr.mxu0 0.0
    %248 = vmatpush1.msra.mxu0 0.0
    %249 = vmatprep.subr.mxu0 0.0
    %250 = vmatpush1.msra.mxu0 0.0
    %251 = vmatprep.subr.mxu0 0.0
    %252 = vmatpush1.msra.mxu0 0.0
    %253 = vmatprep.subr.mxu0 0.0
    %254 = vmatpush1.msra.mxu0 0.0
    %255 = vmatprep.subr.mxu0 0.0
    %256 = vmatpush1.msra.mxu0 0.0
    %257 = vmatprep.subr.mxu0 0.0
    %258 = vmatpush1.msra.mxu0 0.0
    %259 = vmatprep.subr.mxu0 0.0
    %260 = vmatpush1.msra.mxu0 0.0
    %261 = vmatprep.subr.mxu0 0.0
    %262 = vmatpush1.msra.mxu0 0.0
    %263 = vmatprep.subr.mxu0 0.0
    %264 = vmatpush1.msra.mxu0 0.0
    %265 = vmatprep.subr.mxu0 0.0
    %266 = vmatpush1.msra.mxu0 0.0
    %267 = vmatprep.subr.mxu0 0.0
    %268 = vmatpush1.msra.mxu0 0.0
    %269 = vmatprep.subr.mxu0 0.0
    %270 = vmatpush1.msra.mxu0 0.0
    %271 = vmatprep.subr.mxu0 0.0
    %272 = vmatpush1.msra.mxu0 0.0
    %273 = vmatprep.subr.mxu0 0.0
    %274 = vmatpush1.msra.mxu0 0.0
    %275 = vmatprep.mubr.f32.mxu0 0.0
    %276 = vmatmul.mubr.f32.gmra.mrb[0].mxu0 %v209
    %v277 = vpop.f32.mrb[0].mxu0
    %v278 = vadd.f32 %v205, %v277
    %v279 = vpop.f32.mrb[0].mxu0
    %280 = vdwg.mxu0
    %vm281 = vcmask 59392
    %282 = vst.msk [vmem:[#allocation2] sm:$0x7] %vm281, %v278
    // Predicated region
    $region10: #{irisnet_forward.1} parent=1 // pred_check
      _
    $region11: #{irisnet_forward.1} parent=1 // pred_check_branch
      %284 = sbr.rel (0) target = $region13
    $region12: #{irisnet_forward.1} parent=1 // pred_region
      %s286 = ssub.s32 64, 64
      %287 = vsyncadd [#allocation3], %s286
      %s289 = sshll.u32 [#allocation2], 4
      %s290 = int_to_ptr.vmem [resolvable:$true] %s289
      %292 = dma.vmem_to_hbm [thread:$0]  %s290, 64, %s2, [#allocation3]
    $region13: #{irisnet_forward.1} parent=1 // pred_fallthru
      _
    // Predicated region
    $region14: #{irisnet_forward.1} parent=1 // pred_check
      _
    $region15: #{irisnet_forward.1} parent=1 // pred_check_branch
      %294 = sbr.rel (0) target = $region17
    $region16: #{irisnet_forward.1} parent=1 // pred_region
      %295 = dma.done [#allocation3], 64
    $region17: #{irisnet_forward.1} parent=1 // pred_fallthru
      _
    %296 = vsyncpa [#allocation3], 1

</llo_original>
